<compile_context>
chip_gen: v5e
topology: v5e:2x2
jax: 0.10.0
libtpu: 0.0.40
codegen_flags: <defaults>
</compile_context>

<pallas_src>
import functools

import jax
import jax.numpy as jnp
from jax.experimental import pallas as pl
from jax.experimental.pallas import tpu as pltpu

LN_EPS = 1e-6   # timm ViT LayerNorm eps
BN_EPS = 1e-5   # nn.BatchNorm1d default eps


def _round_up(x, m):
    return (x + m - 1) // m * m


def _vmem_capacity_bytes():
    try:
        return int(pltpu.get_tpu_info().vmem_capacity_bytes)
    except Exception:
        return 64 * 1024 * 1024


def _vmem_limit_bytes():
    # Generation-aware VMEM budget (v5e/v6e: 128 MiB phys, v7x: 64 MiB phys).
    cap = _vmem_capacity_bytes()
    return max(32 * 1024 * 1024, (cap * 3) // 4)


# ----------------------------------------------------------------------------
# Kernel helpers
# ----------------------------------------------------------------------------
def _layernorm(v, g, b):
    # two-pass statistics (mean, centered variance): same reduction count,
    # better precision than E[x^2]-E[x]^2.
    mu = jnp.mean(v, axis=-1, keepdims=True)
    c = v - mu
    var = jnp.mean(c * c, axis=-1, keepdims=True)
    return c * jax.lax.rsqrt(var + LN_EPS) * g + b


# ----------------------------------------------------------------------------
# Kernel 1: patch-embed projection  (patches @ W + b), tiled over rows
# ----------------------------------------------------------------------------
def matmul_bias_kernel(x_ref, w_ref, b_ref, o_ref):
    o_ref[...] = (
        jnp.dot(x_ref[...], w_ref[...], preferred_element_type=jnp.float32)
        + b_ref[...]
    )


def patch_embed_matmul(patches2d, w, b):
    m, k = patches2d.shape
    d = w.shape[1]
    # bf16 activations: halves X-side HBM->VMEM DMA on this mem-bound stage.
    x = patches2d.astype(jnp.bfloat16)
    tm = min(512, _round_up(m, 16))          # bf16 row tile (16-aligned)
    m_pad = _round_up(m, tm)
    if m_pad != m:
        x = jnp.pad(x, ((0, m_pad - m), (0, 0)))

    out = pl.pallas_call(
        matmul_bias_kernel,
        grid=(m_pad // tm,),
        in_specs=[
            pl.BlockSpec((tm, k), lambda i: (i, 0)),
            pl.BlockSpec((k, d), lambda i: (0, 0)),   # weights: constant index
            pl.BlockSpec((1, d), lambda i: (0, 0)),
        ],
        out_specs=pl.BlockSpec((tm, d), lambda i: (i, 0)),
        out_shape=jax.ShapeDtypeStruct((m_pad, d), jnp.float32),
        compiler_params=pltpu.CompilerParams(
            dimension_semantics=("parallel",),
            vmem_limit_bytes=_vmem_limit_bytes()),
    )(x, w, b)
    return out[:m]


# ----------------------------------------------------------------------------
# Kernel 2: fused transformer stack + final LayerNorm + bottleneck BatchNorm1d
#   grid = (batch_tiles [parallel], layers [arbitrary])
#   residual stream kept resident in a f32 VMEM scratch across the layer axis;
#   layer l+1 weights prefetched (double-buffered) under layer l compute.
#   Last layer is self.b1 (copy of blocks[-1]); the epilogue applies the final
#   LayerNorm to the CLS rows only and folds in the eval-mode BatchNorm1d, so
#   only a (B, D) CLS feature tensor ever goes back to HBM.
# ----------------------------------------------------------------------------
def make_fused_kernel(bt, n_pad, d, num_heads, head_dim, n_real):
    scale = float(head_dim) ** -0.5

    def kernel(x_ref, kb_ref, n1g, n1b, qkvw, qkvb, projw, projb, n2g, n2b,
               fc1w, fc1b, fc2w, fc2b, nfg, nfb, bnw, bnb, bnrm, bnrv,
               o_ref, acc_ref):
        l = pl.program_id(1)
        nl = pl.num_programs(1)

        @pl.when(l == 0)
        def _():
            acc_ref[...] = x_ref[...].astype(jnp.float32).reshape(bt * n_pad, d)

        x = acc_ref[...]                                   # [Bt*Np, D] f32

        # --- attention ---
        h = _layernorm(x, n1g[0], n1b[0])
        qkv = (jnp.dot(h.astype(jnp.bfloat16), qkvw[0],
                       preferred_element_type=jnp.float32) + qkvb[0]
               ).astype(jnp.bfloat16)                      # [Bt*Np, 3D] bf16

        # gather per-head slices into one batched layout [H*Bt, Np, hd]
        def head(col0):
            return qkv[:, col0:col0 + head_dim].reshape(bt, n_pad, head_dim)

        q = jnp.concatenate([head(hh * head_dim)
                             for hh in range(num_heads)], axis=0) * scale
        k = jnp.concatenate([head(d + hh * head_dim)
                             for hh in range(num_heads)], axis=0)
        v = jnp.concatenate([head(2 * d + hh * head_dim)
                             for hh in range(num_heads)], axis=0)

        # TODO(synk): if the lowered MLIR shows an XLU transpose on the K
        # operand, feed K pre-transposed [H*Bt, hd, Np] instead.
        s = jax.lax.dot_general(q, k, (((2,), (2,)), ((0,), (0,))),
                                preferred_element_type=jnp.float32)
        if n_pad != n_real:                    # mask padded KEY columns
            s = s + kb_ref[...].reshape(1, 1, n_pad)
        s = s - jnp.max(s, axis=-1, keepdims=True)
        p = jnp.exp(s)
        p = p * pl.reciprocal(jnp.sum(p, axis=-1, keepdims=True), approx=True)
        o = jax.lax.dot_general(p.astype(jnp.bfloat16), v,
                                (((2,), (1,)), ((0,), (0,))),
                                preferred_element_type=jnp.float32
                                ).astype(jnp.bfloat16)     # [H*Bt, Np, hd]

        attn = jnp.concatenate([o[hh * bt:(hh + 1) * bt]
                                for hh in range(num_heads)],
                               axis=-1).reshape(bt * n_pad, d)
        attn = jnp.dot(attn, projw[0],
                       preferred_element_type=jnp.float32) + projb[0]
        x = x + attn

        # --- MLP ---
        h2 = _layernorm(x, n2g[0], n2b[0])
        m = jnp.dot(h2.astype(jnp.bfloat16), fc1w[0],
                    preferred_element_type=jnp.float32) + fc1b[0]
        # TODO(synk): timm uses exact (erf) GELU; tanh approximation used here.
        m = jax.nn.gelu(m, approximate=True).astype(jnp.bfloat16)
        m = jnp.dot(m, fc2w[0], preferred_element_type=jnp.float32) + fc2b[0]
        x = x + m

        acc_ref[...] = x

        # self.b1 = Sequential(block, layer_norm); global_feat = b1_feat[:, 0];
        # feat = self.bottleneck(global_feat)  (eval-mode BN folded here).
        # NOTE: padded query rows (n_real..n_pad) carry garbage through the
        # stack; only the CLS row is consumed, so this is harmless in eval.
        @pl.when(l == nl - 1)
        def _():
            cls = x.reshape(bt, n_pad, d)[:, 0:1, :].reshape(bt, d)
            y = _layernorm(cls, nfg[...], nfb[...])
            o_ref[...] = ((y - bnrm[...]) * jax.lax.rsqrt(bnrv[...] + BN_EPS)
                          * bnw[...] + bnb[...])

    return kernel


def _pick_batch_tile(b, n_pad, d, mlp_dim, num_heads):
    """Largest batch tile whose working set fits the chip's VMEM budget."""
    budget = int(_vmem_capacity_bytes() * 0.55)
    # double-buffered per-layer weights: bf16 matmul weights + f32 norm/bias
    w_bytes = 2 * (2 * (3 * d * d + d * d + 2 * d * mlp_dim)
                   + 4 * (4 * d + 3 * d + mlp_dim + d))
    for bt in (32, 16, 8, 4, 2, 1):
        if b % bt != 0:
            continue
        rows = bt * n_pad
        act = (rows * d * 4                                  # f32 residual
               + 2 * rows * d * 2                            # bf16 input x2buf
               + rows * 3 * d * (4 + 2)                      # qkv f32 + bf16
               + num_heads * bt * n_pad * n_pad * 4 * 2      # scores + probs
               + rows * mlp_dim * (4 + 2)                    # mlp hidden
               + 4 * rows * d * 4)                           # misc temporaries
        if w_bytes + act <= budget:
            return bt
    return 1


def fused_transformer(tokens, key_bias, stack, nf_g, nf_b,
                      bn_w, bn_b, bn_rm, bn_rv, num_heads, n_real):
    b, n_pad, d = tokens.shape
    nl = stack["qkv_w"].shape[0]
    mlp_dim = stack["fc1_w"].shape[2]
    assert d % num_heads == 0
    head_dim = d // num_heads
    bt = _pick_batch_tile(b, n_pad, d, mlp_dim, num_heads)
    kernel = make_fused_kernel(bt, n_pad, d, num_heads, head_dim, n_real)

    def wspec(shape):
        blk = (1,) + tuple(shape[1:])
        return pl.BlockSpec(blk, lambda i, l: (l,) + (0,) * (len(shape) - 1))

    cvec = pl.BlockSpec((1, d), lambda i, l: (0, 0))   # constant (1, D) vectors
    in_specs = [
        pl.BlockSpec((bt, n_pad, d), lambda i, l: (i, 0, 0)),   # tokens (bf16)
        pl.BlockSpec((1, n_pad), lambda i, l: (0, 0)),          # key bias
        wspec(stack["n1_g"].shape), wspec(stack["n1_b"].shape),
        wspec(stack["qkv_w"].shape), wspec(stack["qkv_b"].shape),
        wspec(stack["proj_w"].shape), wspec(stack["proj_b"].shape),
        wspec(stack["n2_g"].shape), wspec(stack["n2_b"].shape),
        wspec(stack["fc1_w"].shape), wspec(stack["fc1_b"].shape),
        wspec(stack["fc2_w"].shape), wspec(stack["fc2_b"].shape),
        cvec, cvec,                  # final LayerNorm gamma / beta
        cvec, cvec, cvec, cvec,      # BN weight / bias / running mean / var
    ]
    return pl.pallas_call(
        kernel,
        grid=(b // bt, nl),
        in_specs=in_specs,
        out_specs=pl.BlockSpec((bt, d), lambda i, l: (i, 0)),
        out_shape=jax.ShapeDtypeStruct((b, d), jnp.float32),
        scratch_shapes=[pltpu.VMEM((bt * n_pad, d), jnp.float32)],
        compiler_params=pltpu.CompilerParams(
            dimension_semantics=("parallel", "arbitrary"),
            vmem_limit_bytes=_vmem_limit_bytes()),
    )(tokens, key_bias,
      stack["n1_g"], stack["n1_b"], stack["qkv_w"], stack["qkv_b"],
      stack["proj_w"], stack["proj_b"], stack["n2_g"], stack["n2_b"],
      stack["fc1_w"], stack["fc1_b"], stack["fc2_w"], stack["fc2_b"],
      nf_g, nf_b, bn_w, bn_b, bn_rm, bn_rv)


# ----------------------------------------------------------------------------
# Glue: patch extraction, token assembly, parameter init, full forward
# ----------------------------------------------------------------------------
def img_to_patches(x, patch):
    # x: NCHW -> [B, num_patches, C*patch*patch] in Conv2d (C, ph, pw) order
    b, c, hh, ww = x.shape
    gh, gw = hh // patch, ww // patch
    x = x.reshape(b, c, gh, patch, gw, patch)
    x = x.transpose(0, 2, 4, 1, 3, 5)
    return x.reshape(b, gh * gw, c * patch * patch)


def embed_tokens(x, params, patch, n_pad):
    b = x.shape[0]
    patches = img_to_patches(x, patch)
    p_cnt, k = patches.shape[1], patches.shape[2]
    d = params["patch_w"].shape[1]
    tok = patch_embed_matmul(patches.reshape(b * p_cnt, k),
                             params["patch_w"], params["patch_b"])
    tok = tok.reshape(b, p_cnt, d)
    cls = jnp.broadcast_to(params["cls"], (b, 1, d))
    tok = jnp.concatenate([cls, tok], axis=1) + params["pos"]
    n_tok = p_cnt + 1
    if n_pad > n_tok:
        tok = jnp.pad(tok, ((0, 0), (0, n_pad - n_tok), (0, 0)))
    return tok


def init_params(key, c, patch, d, mlp_dim, num_patches, num_base_blocks):
    patch_dim = c * patch * patch
    n_tok = num_patches + 1
    keys = jax.random.split(key, 4 + num_base_blocks)
    p = {
        # matmul weights in bf16 (f32 accumulation in-kernel); biases/LN in f32
        "patch_w": (jax.random.normal(keys[0], (patch_dim, d)) * 0.02
                    ).astype(jnp.bfloat16),
        "patch_b": jnp.zeros((1, d), jnp.float32),
        "cls": jax.random.normal(keys[1], (1, 1, d)) * 0.02,
        "pos": jax.random.normal(keys[2], (1, n_tok, d)) * 0.02,
    }
    layers = []
    for i in range(num_base_blocks):
        bk = jax.random.split(keys[3 + i], 4)
        layers.append(dict(
            n1_g=jnp.ones((1, d)), n1_b=jnp.zeros((1, d)),
            qkv_w=(jax.random.normal(bk[0], (d, 3 * d)) * 0.02
                   ).astype(jnp.bfloat16),
            qkv_b=jnp.zeros((1, 3 * d)),
            proj_w=(jax.random.normal(bk[1], (d, d)) * 0.02
                    ).astype(jnp.bfloat16),
            proj_b=jnp.zeros((1, d)),
            n2_g=jnp.ones((1, d)), n2_b=jnp.zeros((1, d)),
            fc1_w=(jax.random.normal(bk[2], (d, mlp_dim)) * 0.02
                   ).astype(jnp.bfloat16),
            fc1_b=jnp.zeros((1, mlp_dim)),
            fc2_w=(jax.random.normal(bk[3], (mlp_dim, d)) * 0.02
                   ).astype(jnp.bfloat16),
            fc2_b=jnp.zeros((1, d)),
        ))
    # self.b1 = Sequential(deepcopy(base.blocks[-1]), deepcopy(base.norm))
    layers.append(dict(layers[-1]))
    # stack per-layer weights along a leading layer axis for the fused kernel
    p["stack"] = {name: jnp.stack([lyr[name] for lyr in layers], axis=0)
                  for name in layers[0]}
    # base.norm (final LayerNorm), deepcopied into b1
    p["norm_g"] = jnp.ones((1, d))
    p["norm_b"] = jnp.zeros((1, d))
    # bottleneck BatchNorm1d: weights_init_kaiming -> weight=1, bias=0;
    # running stats at PyTorch defaults (mean=0, var=1), eval mode.
    p["bn_w"] = jnp.ones((1, d))
    p["bn_b"] = jnp.zeros((1, d))
    p["bn_rm"] = jnp.zeros((1, d))
    p["bn_rv"] = jnp.ones((1, d))
    return p


def build_transformer_forward(x1, x2, params, num_heads, patch):
    # --- self.base (minimal ViT stand-in; patch_embed2 = deepcopy(patch_embed)
    #     so both streams share identical projection weights) ---
    n_tok = params["pos"].shape[1]
    n_pad = _round_up(n_tok, 16)         # 16-aligned tokens (bf16 tiling)
    t1 = embed_tokens(x1, params, patch, n_pad)
    t2 = embed_tokens(x2, params, patch, n_pad)
    tokens = jnp.concatenate([t1, t2], axis=0).astype(jnp.bfloat16)  # [B,Np,D]
    # key-padding bias built once in the wrapper (constant input to the kernel)
    col = jnp.arange(n_pad)
    key_bias = jnp.where(col < n_tok, 0.0, -1e30).astype(jnp.float32
                                                         ).reshape(1, n_pad)
    # --- base blocks + b1 (= last-block copy) + final LayerNorm + bottleneck
    #     BatchNorm1d, all fused; returns the (B, D) CLS feature directly ---
    feat = fused_transformer(tokens, key_bias, params["stack"],
                             params["norm_g"], params["norm_b"],
                             params["bn_w"], params["bn_b"],
                             params["bn_rm"], params["bn_rv"],
                             num_heads=num_heads, n_real=n_tok)
    return feat                                            # eval-mode return


# ----------------------------------------------------------------------------
if __name__ == "__main__":
    B1, B2 = 2, 2
    C, H, W = 3, 16, 16
    PATCH = 8                       # -> 2x2 = 4 patches per image, N = 5 tokens
    D = 32                          # in_planes / feat_dim
    HEADS = 4
    MLP = 4 * D
    NUM_PATCHES = (H // PATCH) * (W // PATCH)
    NUM_BASE_BLOCKS = 2

    key = jax.random.PRNGKey(0)
    k_x1, k_x2, k_p = jax.random.split(key, 3)
    x1 = jax.random.normal(k_x1, (B1, C, H, W), jnp.float32)   # RGB stream
    x2 = jax.random.normal(k_x2, (B2, C, H, W), jnp.float32)   # IR  stream

    params = init_params(k_p, C, PATCH, D, MLP, NUM_PATCHES, NUM_BASE_BLOCKS)

    fwd = functools.partial(build_transformer_forward,
                            num_heads=HEADS, patch=PATCH)
    feat = fwd(x1, x2, params=params)
    feat = jax.block_until_ready(feat)

    assert feat.shape == (B1 + B2, D), feat.shape
    assert feat.dtype == jnp.float32
    assert bool(jnp.all(jnp.isfinite(feat)))
    print("KERNEL_OK")
</pallas_src>

<mosaic_0001>
module attributes {stable_mosaic.version = 11 : i64} {
  func.func @matmul_bias_kernel(%arg0: i32, %arg1: memref<16x192xbf16, #tpu.memory_space<vmem>>, %arg2: memref<192x32xbf16, #tpu.memory_space<vmem>>, %arg3: memref<1x32xf32, #tpu.memory_space<vmem>>, %arg4: memref<16x32xf32, #tpu.memory_space<vmem>>) attributes {dimension_semantics = [#tpu.dimension_semantics<parallel>], iteration_bounds = array<i64: 1>, scalar_prefetch = 0 : i64, scratch_operands = 0 : i64, tpu.core_type = #tpu.core_type<tc>, window_params = [{transform_indices = @transform_0, window_bounds = array<i64: 16, 192>}, {pipeline_mode = #tpu.pipeline_mode<synchronous>, transform_indices = @transform_1, window_bounds = array<i64: 192, 32>}, {pipeline_mode = #tpu.pipeline_mode<synchronous>, transform_indices = @transform_2, window_bounds = array<i64: 1, 32>}, {transform_indices = @transform_3, window_bounds = array<i64: 16, 32>}]} {
    %c0 = arith.constant 0 : index
    %c0_0 = arith.constant 0 : index
    %0 = vector.load %arg1[%c0, %c0_0] : memref<16x192xbf16, #tpu.memory_space<vmem>>, vector<16x192xbf16>
    %c0_1 = arith.constant 0 : index
    %c0_2 = arith.constant 0 : index
    %1 = vector.load %arg2[%c0_1, %c0_2] : memref<192x32xbf16, #tpu.memory_space<vmem>>, vector<192x32xbf16>
    %cst = arith.constant dense<0.000000e+00> : vector<16x32xf32>
    %2 = tpu.matmul %0, %1, %cst {dimension_numbers = #tpu.dot_dimension_numbers<[1], [0], [0], [1], [0, 0, 1, 1], [], []>} : vector<16x192xbf16>, vector<192x32xbf16>, vector<16x32xf32> -> vector<16x32xf32>
    %c0_3 = arith.constant 0 : index
    %c0_4 = arith.constant 0 : index
    %3 = vector.load %arg3[%c0_3, %c0_4] : memref<1x32xf32, #tpu.memory_space<vmem>>, vector<1x32xf32>
    %4 = vector.broadcast %3 : vector<1x32xf32> to vector<16x32xf32>
    %5 = arith.addf %2, %4 : vector<16x32xf32>
    %c0_5 = arith.constant 0 : index
    %c0_6 = arith.constant 0 : index
    %6 = vector.load %arg4[%c0_5, %c0_6] : memref<16x32xf32, #tpu.memory_space<vmem>>, vector<16x32xf32>
    tpu.vector_store %arg4[%c0_5, %c0_6], %5 {strides = array<i32>} : memref<16x32xf32, #tpu.memory_space<vmem>>, vector<16x32xf32>,
    return
  }
  func.func @transform_0(%arg0: i32) -> (i32, i32) {
    %c0_i32 = arith.constant 0 : i32
    %c0_i32_0 = arith.constant 0 : i32
    return %arg0, %c0_i32 : i32, i32
  }
  func.func @transform_1(%arg0: i32) -> (i32, i32) {
    %c0_i32 = arith.constant 0 : i32
    %c0_i32_0 = arith.constant 0 : i32
    %c0_i32_1 = arith.constant 0 : i32
    return %c0_i32, %c0_i32_0 : i32, i32
  }
  func.func @transform_2(%arg0: i32) -> (i32, i32) {
    %c0_i32 = arith.constant 0 : i32
    %c0_i32_0 = arith.constant 0 : i32
    %c0_i32_1 = arith.constant 0 : i32
    return %c0_i32, %c0_i32_0 : i32, i32
  }
  func.func @transform_3(%arg0: i32) -> (i32, i32) {
    %c0_i32 = arith.constant 0 : i32
    %c0_i32_0 = arith.constant 0 : i32
    return %arg0, %c0_i32 : i32, i32
  }
}

</mosaic_0001>

<llo_original>
// kernel: tpu_custom_call.1
$region0: #{tpu_custom_call.1}
  #allocation0 [shape = 'u32[]', space=smem, size = 0x4, offset = 0x4, fixed_abs, tag = 'smem constant byte address 0x4 - core index']
  #allocation1 [shape = 'u32[72,128]{1,0:T(1,128)}', space=vmem, size = 0x9000, scoped, tag = 'internal scratch']
  %s0 = inlined_call_operand.vmem [shape: bf16[16,192], index: 0, kind: input, shape index: {}]
  %s1 = inlined_call_operand.vmem [shape: bf16[192,32], index: 1, kind: input, shape index: {}]
  %s2 = inlined_call_operand.vmem [shape: f32[1,32], index: 2, kind: input, shape index: {}]
  %s3 = inlined_call_operand.hbm [shape: f32[16,32], index: 3, kind: output, shape index: {}]
  %s4 = sld [smem:[#allocation0]]
  $region22: #{tpu_custom_call.1} parent=0
    _
  %s6 = ssub.s32 1, %s4
  %s7 = scalar_select 0, %s6, %s4
  $region1: #{tpu_custom_call.1} parent=0
    #allocation2 [shape = 'u8[8192]{0}', space=vmem, size = 0x2000, scoped, tag = 'output window, operand 0, single buffered']
    #allocation3 [shape = 's32[1]{0}', space=sflag, size = 0x4, scoped, tag = 'scoped memory for tpu_custom_call.1']
    %8 = vsyncpa [#allocation3], 0
    // Predicated region
    $region2: #{tpu_custom_call.1} parent=1 // pred_check
      _
    $region3: #{tpu_custom_call.1} parent=1 // pred_check_branch
      %10 = sbr.rel (0) target = $region5
    $region4: #{tpu_custom_call.1} parent=1 // pred_region
      _
    $region5: #{tpu_custom_call.1} parent=1 // pred_fallthru
      _
    // Predicated region
    $region6: #{tpu_custom_call.1} parent=1 // pred_check
      _
    $region7: #{tpu_custom_call.1} parent=1 // pred_check_branch
      %12 = sbr.rel (0) target = $region9
    $region8: #{tpu_custom_call.1} parent=1 // pred_region
      _
    $region9: #{tpu_custom_call.1} parent=1 // pred_fallthru
      _
    // Predicated region
    $region10: #{tpu_custom_call.1} parent=1 // pred_check
      _
    $region11: #{tpu_custom_call.1} parent=1 // pred_check_branch
      %14 = sbr.rel (0) target = $region13
    $region12: #{tpu_custom_call.1} parent=1 // pred_region
      _
    $region13: #{tpu_custom_call.1} parent=1 // pred_fallthru
      _
    %v16 = vld [vmem:[%s0] sm:$0xff]
    %v17 = vld [vmem:[%s0 + $0x8] sm:$0xff]
    %v18 = vld [vmem:[%s1] sm:$0xf]
    %v19 = vld [vmem:[%s1 + $0x4] sm:$0xf]
    %v20 = vld [vmem:[%s1 + $0x8] sm:$0xf]
    %v21 = vld [vmem:[%s1 + $0xc] sm:$0xf]
    %v22 = vld [vmem:[%s1 + $0x10] sm:$0xf]
    %v23 = vld [vmem:[%s1 + $0x14] sm:$0xf]
    %v24 = vld [vmem:[%s1 + $0x18] sm:$0xf]
    %v25 = vld [vmem:[%s1 + $0x1c] sm:$0xf]
    %v26 = vld [vmem:[%s1 + $0x20] sm:$0xf]
    %v27 = vld [vmem:[%s1 + $0x24] sm:$0xf]
    %v28 = vld [vmem:[%s1 + $0x28] sm:$0xf]
    %v29 = vld [vmem:[%s1 + $0x2c] sm:$0xf]
    %v30 = vld [vmem:[%s1 + $0x30] sm:$0xf]
    %v31 = vld [vmem:[%s1 + $0x34] sm:$0xf]
    %v32 = vld [vmem:[%s1 + $0x38] sm:$0xf]
    %v33 = vld [vmem:[%s1 + $0x3c] sm:$0xf]
    %v34 = vld [vmem:[%s1 + $0x40] sm:$0xf]
    %v35 = vld [vmem:[%s1 + $0x44] sm:$0xf]
    %v36 = vld [vmem:[%s1 + $0x48] sm:$0xf]
    %v37 = vld [vmem:[%s1 + $0x4c] sm:$0xf]
    %v38 = vld [vmem:[%s1 + $0x50] sm:$0xf]
    %v39 = vld [vmem:[%s1 + $0x54] sm:$0xf]
    %v40 = vld [vmem:[%s1 + $0x58] sm:$0xf]
    %v41 = vld [vmem:[%s1 + $0x5c] sm:$0xf]
    %v42 = vld [vmem:[%s2] sm:$0x1]
    %v44 = vperm.slane %v42, 0
    %v48 = vunpack.c.l.b16 %v16
    %v49 = vunpack.c.h.b16 %v16
    %v50 = vunpack.c.l.b16 %v17
    %v51 = vunpack.c.h.b16 %v17
    %v52 = vpack.c.b16 %v50, %v48
    %v53 = vpack.c.b16 %v51, %v49
    %v79 = vunpack.c.l.b16 %v18
    %v80 = vunpack.c.l.b16 %v19
    %v81 = vunpack.c.l.b16 %v20
    %v82 = vunpack.c.l.b16 %v21
    %v83 = vunpack.c.l.b16 %v22
    %v84 = vunpack.c.l.b16 %v23
    %v85 = vunpack.c.l.b16 %v24
    %v86 = vunpack.c.l.b16 %v25
    %v87 = vunpack.c.l.b16 %v26
    %v88 = vunpack.c.l.b16 %v27
    %v89 = vunpack.c.l.b16 %v28
    %v90 = vunpack.c.l.b16 %v29
    %v91 = vunpack.c.l.b16 %v30
    %v92 = vunpack.c.l.b16 %v31
    %v93 = vunpack.c.l.b16 %v32
    %v94 = vunpack.c.l.b16 %v33
    %v95 = vunpack.c.l.b16 %v34
    %v96 = vunpack.c.l.b16 %v35
    %v97 = vunpack.c.l.b16 %v36
    %v98 = vunpack.c.l.b16 %v37
    %v99 = vunpack.c.l.b16 %v38
    %v100 = vunpack.c.l.b16 %v39
    %v101 = vunpack.c.l.b16 %v40
    %v102 = vunpack.c.l.b16 %v41
    %v103 = vpack.c.b16 %v80, %v79
    %v104 = vpack.c.b16 %v82, %v81
    %v105 = vpack.c.b16 %v84, %v83
    %v106 = vpack.c.b16 %v86, %v85
    %v107 = vpack.c.b16 %v88, %v87
    %v108 = vpack.c.b16 %v90, %v89
    %v109 = vpack.c.b16 %v92, %v91
    %v110 = vpack.c.b16 %v94, %v93
    %v111 = vpack.c.b16 %v96, %v95
    %v112 = vpack.c.b16 %v98, %v97
    %v113 = vpack.c.b16 %v100, %v99
    %v114 = vpack.c.b16 %v102, %v101
    %vm127 = vcmask 523264
    %v129 = vsel %vm127, %v53, 0
    %131 = vmatpush.bf16.msra.mxu0 %v110
    %132 = vmatpush.bf16.msra.mxu0 %v109
    %133 = vmatpush.bf16.msra.mxu0 %v108
    %134 = vmatpush.bf16.msra.mxu0 %v107
    %135 = vmatpush.bf16.msra.mxu0 %v106
    %136 = vmatpush.bf16.msra.mxu0 %v105
    %137 = vmatpush.bf16.msra.mxu0 %v104
    %138 = vmatpush.bf16.msra.mxu0 %v103
    %139 = vmatmul.bf16.gmra.mxu0 %v52
    %v140 = vpop.f32.mrf.mxu0
    %v141 = vadd.f32 %v44, %v140
    %v142 = vpop.f32.mrf.mxu0
    %v143 = vadd.f32 %v44, %v142
    %144 = vdwg.mxu0
    %145 = vmatpush.bf16.msra.mxu0 0
    %146 = vmatpush.bf16.msra.mxu0 0
    %147 = vmatpush.bf16.msra.mxu0 0
    %148 = vmatpush.bf16.msra.mxu0 0
    %149 = vmatpush.bf16.msra.mxu0 %v114
    %150 = vmatpush.bf16.msra.mxu0 %v113
    %151 = vmatpush.bf16.msra.mxu0 %v112
    %152 = vmatpush.bf16.msra.mxu0 %v111
    %153 = vmatmul.bf16.gmra.mxu0 %v129
    %v154 = vpop.f32.mrf.mxu0
    %v155 = vadd.f32 %v141, %v154
    %v156 = vpop.f32.mrf.mxu0
    %v157 = vadd.f32 %v143, %v156
    %158 = vdwg.mxu0
    %vm159 = vcmask 261120
    %160 = vst.msk [vmem:[#allocation2] sm:$0xff] %vm159, %v155
    %161 = vst.msk [vmem:[#allocation2 + $0x8] sm:$0xff] %vm159, %v157
    // Predicated region
    $region14: #{tpu_custom_call.1} parent=1 // pred_check
      _
    $region15: #{tpu_custom_call.1} parent=1 // pred_check_branch
      %163 = sbr.rel (0) target = $region17
    $region16: #{tpu_custom_call.1} parent=1 // pred_region
      %165 = vsyncadd [#allocation3], 0
      %s166 = sshll.u32 [#allocation2], 4
      %s167 = int_to_ptr.vmem [resolvable:$true] %s166
      %s168 = sshll.u32 %s3, 4
      %s169 = int_to_ptr.hbm [resolvable:$true] %s168
      %174 = dma.vmem_to_hbm [thread:$0]  %s167, 256, %s169, [#allocation3], 128, 128, 8
    $region17: #{tpu_custom_call.1} parent=1 // pred_fallthru
      _
    // Predicated region
    $region18: #{tpu_custom_call.1} parent=1 // pred_check
      _
    $region19: #{tpu_custom_call.1} parent=1 // pred_check_branch
      %176 = sbr.rel (0) target = $region21
    $region20: #{tpu_custom_call.1} parent=1 // pred_region
      %178 = dma.done [#allocation3], 256
    $region21: #{tpu_custom_call.1} parent=1 // pred_fallthru
      _
    %179 = vsyncpa [#allocation3], 1

</llo_original>
